<compile_context>
chip_gen: v7x
topology: tpu7x:2x2x1
jax: 0.10.0
libtpu: 0.0.40
codegen_flags: <defaults>
</compile_context>

<pallas_src>
import functools

import jax
import jax.numpy as jnp
from jax.experimental import pallas as pl
from jax.experimental.pallas import tpu as pltpu


# --------------------------------------------------------------------------
# Kernel 1: L-tiled pooling (sum / max over L) + SE & CBAM channel-gate MLPs.
# --------------------------------------------------------------------------
def _pool_gate_kernel(x_ref, w_ca1_ref, w_ca2_ref, w_se1_ref, w_se2_ref,
                      se_ref, ca_ref, sum_acc, max_acc, *, L, TL):
    l_id = pl.program_id(0)
    n_l = pl.num_programs(0)

    @pl.when(l_id == 0)
    def _init():
        sum_acc[...] = jnp.zeros_like(sum_acc)
        max_acc[...] = jnp.full_like(max_acc, -jnp.inf)

    xs = x_ref[...].astype(jnp.float32)                 # (B, C, TL)
    if L % TL != 0:
        # Ragged last tile: mask out-of-range lanes (0 for sum, -inf for max).
        pos = jax.lax.broadcasted_iota(jnp.int32, xs.shape, 2) + l_id * TL
        valid = pos < L
        xs_sum = jnp.where(valid, xs, 0.0)
        xs_max = jnp.where(valid, xs, -jnp.inf)
    else:
        xs_sum = xs
        xs_max = xs
    sum_acc[...] += jnp.sum(xs_sum, axis=-1)
    max_acc[...] = jnp.maximum(max_acc[...], jnp.max(xs_max, axis=-1))

    @pl.when(l_id == n_l - 1)
    def _finalize():
        avg = sum_acc[...] * (1.0 / L)                  # (B, C)
        mx = max_acc[...]                               # (B, C)
        B = avg.shape[0]

        # CBAM channel attention: one batched pass over [avg; max].
        stacked = jnp.concatenate([avg, mx], axis=0)                        # (2B, C)
        h = jnp.dot(stacked, w_ca1_ref[...], preferred_element_type=jnp.float32)
        h = jnp.maximum(h, 0.0)
        o = jnp.dot(h, w_ca2_ref[...], preferred_element_type=jnp.float32)  # (2B, C)
        ca_ref[...] = jax.nn.sigmoid(o[:B] + o[B:]).astype(ca_ref.dtype)

        # SE gate (avg pool only).
        hs = jnp.dot(avg, w_se1_ref[...], preferred_element_type=jnp.float32)
        hs = jnp.maximum(hs, 0.0)
        se = jnp.dot(hs, w_se2_ref[...], preferred_element_type=jnp.float32)
        se_ref[...] = jax.nn.sigmoid(se).astype(se_ref.dtype)


# --------------------------------------------------------------------------
# Kernel 2: apply gates, spatial attention, 1x1 fusion conv, BN, residual.
# --------------------------------------------------------------------------
def _apply_fuse_kernel(x_ref, se_ref, ca_ref, w_sa_ref, w_fuse_ref,
                       bn_scale_ref, bn_shift_ref, o_ref, *, K):
    x = x_ref[0].astype(jnp.float32)                    # (C, L)
    se = se_ref[0].astype(jnp.float32)                  # (C, 1)
    ca = ca_ref[0].astype(jnp.float32)                  # (C, 1)
    L = x.shape[1]
    pad = K // 2

    se_out = x * se                                     # SE branch
    x_ch = x * ca                                       # CBAM channel-gated input

    # Spatial attention: per-position channel mean / max, then K-tap conv over
    # L (zero padding) expressed as a weighted sum of shifted windows.
    avg_c = jnp.mean(x_ch, axis=0, keepdims=True)       # (1, L)
    max_c = jnp.max(x_ch, axis=0, keepdims=True)        # (1, L)
    zpad = jnp.zeros((1, pad), jnp.float32)
    pa = jnp.concatenate([zpad, avg_c, zpad], axis=1)   # (1, L + 2*pad)
    pm = jnp.concatenate([zpad, max_c, zpad], axis=1)
    shifted = jnp.concatenate(
        [pa[:, k:k + L] for k in range(K)] + [pm[:, k:k + L] for k in range(K)],
        axis=0)                                         # (2K, L)
    s = jnp.sum(w_sa_ref[...].astype(jnp.float32) * shifted, axis=0,
                keepdims=True)                          # (1, L)
    s = jax.nn.sigmoid(s)
    cbam_out = x_ch * s                                 # (C, L)

    # Fusion 1x1 conv over concat([se_out, cbam_out]) == one MXU matmul.
    combined = jnp.concatenate([se_out, cbam_out], axis=0)              # (2C, L)
    fused = jnp.dot(w_fuse_ref[...].astype(jnp.float32), combined,
                    preferred_element_type=jnp.float32)                 # (C, L)
    # Eval-mode BatchNorm1d folded into per-channel scale/shift.
    fused = fused * bn_scale_ref[...] + bn_shift_ref[...]
    o_ref[0] = (x + fused).astype(o_ref.dtype)


def _choose_l_tile(B, C, L, *, max_tl=2048, vmem_budget=16 * 1024 * 1024):
    """Largest lane-dense L tile (multiple of 128) fitting a double-buffered
    VMEM budget; whole L for short sequences."""
    if L <= max_tl:
        return L
    by_budget = vmem_budget // (2 * B * C * 4)          # 2 buffers, f32
    tl = min(max_tl, by_budget)
    tl = max(128, (tl // 128) * 128)
    return min(tl, L)


def multi_scale_attention(x, w_se1, w_se2, w_ca1, w_ca2, w_sa, w_fuse,
                          bn_gamma, bn_beta, bn_mean, bn_var,
                          *, eps=1e-5, l_tile=None):
    """Forward pass of MultiScaleAttention.

    x      : (B, C, L)
    w_se1  : (H, C)      SE MLP first Linear (PyTorch out x in), no bias
    w_se2  : (C, H)
    w_ca1  : (H, C)      CBAM ChannelAttention MLP
    w_ca2  : (C, H)
    w_sa   : (1, 2, K)   SpatialAttention Conv1d weight, no bias
    w_fuse : (C, 2C, 1)  fusion Conv1d (kernel_size=1) weight, no bias
    bn_*   : (C,)        BatchNorm1d gamma / beta / running_mean / running_var
    """
    B, C, L = x.shape
    H = w_se1.shape[0]
    K = w_sa.shape[-1]
    f32 = jnp.float32

    TL = int(l_tile) if l_tile is not None else _choose_l_tile(B, C, L)
    if TL != L:
        assert TL % 128 == 0, "L tile must be lane-aligned (multiple of 128)"
    n_l = pl.cdiv(L, TL)

    # Pre-transpose MLP weights (wrapper-side layout plumbing; no in-kernel .T).
    w_ca1_t = jnp.asarray(w_ca1, f32).T                 # (C, H)
    w_ca2_t = jnp.asarray(w_ca2, f32).T                 # (H, C)
    w_se1_t = jnp.asarray(w_se1, f32).T                 # (C, H)
    w_se2_t = jnp.asarray(w_se2, f32).T                 # (H, C)

    # ---- Kernel 1: pooling over L + gating MLPs (L axis is the reduction). ----
    se_scale, ca_scale = pl.pallas_call(
        functools.partial(_pool_gate_kernel, L=L, TL=TL),
        out_shape=(jax.ShapeDtypeStruct((B, C), f32),
                   jax.ShapeDtypeStruct((B, C), f32)),
        grid=(n_l,),
        in_specs=[
            pl.BlockSpec((B, C, TL), lambda l: (0, 0, l)),
            pl.BlockSpec((C, H), lambda l: (0, 0)),
            pl.BlockSpec((H, C), lambda l: (0, 0)),
            pl.BlockSpec((C, H), lambda l: (0, 0)),
            pl.BlockSpec((H, C), lambda l: (0, 0)),
        ],
        out_specs=(pl.BlockSpec((B, C), lambda l: (0, 0)),
                   pl.BlockSpec((B, C), lambda l: (0, 0))),
        scratch_shapes=[pltpu.VMEM((B, C), f32), pltpu.VMEM((B, C), f32)],
        compiler_params=pltpu.CompilerParams(
            dimension_semantics=("arbitrary",)),
    )(x, w_ca1_t, w_ca2_t, w_se1_t, w_se2_t)

    # ---- Kernel 2: per-batch (parallel) apply + spatial attention + fusion. ----
    se_b = se_scale[:, :, None]                         # (B, C, 1)
    ca_b = ca_scale[:, :, None]                         # (B, C, 1)
    w_sa_col = jnp.asarray(w_sa, f32).reshape(2 * K, 1)
    w_fuse_mat = jnp.asarray(w_fuse, f32).reshape(C, 2 * C)
    bn_scale = (jnp.asarray(bn_gamma, f32) *
                jax.lax.rsqrt(jnp.asarray(bn_var, f32) + eps)).reshape(C, 1)
    bn_shift = (jnp.asarray(bn_beta, f32).reshape(C, 1)
                - jnp.asarray(bn_mean, f32).reshape(C, 1) * bn_scale)

    out = pl.pallas_call(
        functools.partial(_apply_fuse_kernel, K=K),
        out_shape=jax.ShapeDtypeStruct((B, C, L), x.dtype),
        grid=(B,),
        in_specs=[
            pl.BlockSpec((1, C, L), lambda b: (b, 0, 0)),
            pl.BlockSpec((1, C, 1), lambda b: (b, 0, 0)),
            pl.BlockSpec((1, C, 1), lambda b: (b, 0, 0)),
            pl.BlockSpec((2 * K, 1), lambda b: (0, 0)),
            pl.BlockSpec((C, 2 * C), lambda b: (0, 0)),
            pl.BlockSpec((C, 1), lambda b: (0, 0)),
            pl.BlockSpec((C, 1), lambda b: (0, 0)),
        ],
        out_specs=pl.BlockSpec((1, C, L), lambda b: (b, 0, 0)),
        compiler_params=pltpu.CompilerParams(
            dimension_semantics=("parallel",)),
    )(x, se_b, ca_b, w_sa_col, w_fuse_mat, bn_scale, bn_shift)
    return out


# --------------------------------------------------------------------------
# Pure-JAX reference matching the PyTorch module (eval-mode BatchNorm).
# --------------------------------------------------------------------------
def multi_scale_attention_reference(x, w_se1, w_se2, w_ca1, w_ca2, w_sa, w_fuse,
                                    bn_gamma, bn_beta, bn_mean, bn_var,
                                    eps=1e-5):
    P = jax.lax.Precision.HIGHEST
    K = w_sa.shape[-1]
    avg = jnp.mean(x, axis=-1)
    mx = jnp.max(x, axis=-1)

    # SE block
    h = jnp.maximum(jnp.dot(avg, w_se1.T, precision=P), 0.0)
    se_scale = jax.nn.sigmoid(jnp.dot(h, w_se2.T, precision=P))
    se_out = x * se_scale[:, :, None]

    # CBAM channel attention
    def ca_mlp(v):
        return jnp.dot(jnp.maximum(jnp.dot(v, w_ca1.T, precision=P), 0.0),
                       w_ca2.T, precision=P)
    ca_scale = jax.nn.sigmoid(ca_mlp(avg) + ca_mlp(mx))
    x_ch = x * ca_scale[:, :, None]

    # CBAM spatial attention
    sp_in = jnp.concatenate([jnp.mean(x_ch, axis=1, keepdims=True),
                             jnp.max(x_ch, axis=1, keepdims=True)], axis=1)
    s = jax.lax.conv_general_dilated(
        sp_in, w_sa, window_strides=(1,), padding=[(K // 2, K // 2)],
        dimension_numbers=("NCH", "OIH", "NCH"), precision=P)
    cbam_out = x_ch * jax.nn.sigmoid(s)

    # Fusion 1x1 conv + eval-mode BN + residual
    combined = jnp.concatenate([se_out, cbam_out], axis=1)
    fused = jax.lax.conv_general_dilated(
        combined, w_fuse, window_strides=(1,), padding=[(0, 0)],
        dimension_numbers=("NCH", "OIH", "NCH"), precision=P)
    fused = ((fused - bn_mean[None, :, None])
             * jax.lax.rsqrt(bn_var[None, :, None] + eps)
             * bn_gamma[None, :, None] + bn_beta[None, :, None])
    return x + fused


if __name__ == "__main__":
    B, C, L = 2, 64, 256
    reduction, K = 16, 7
    H = C // reduction

    key = jax.random.PRNGKey(0)
    ks = jax.random.split(key, 11)
    x = jax.random.normal(ks[0], (B, C, L), dtype=jnp.float32)
    w_se1 = 0.1 * jax.random.normal(ks[1], (H, C), dtype=jnp.float32)
    w_se2 = 0.1 * jax.random.normal(ks[2], (C, H), dtype=jnp.float32)
    w_ca1 = 0.1 * jax.random.normal(ks[3], (H, C), dtype=jnp.float32)
    w_ca2 = 0.1 * jax.random.normal(ks[4], (C, H), dtype=jnp.float32)
    w_sa = 0.1 * jax.random.normal(ks[5], (1, 2, K), dtype=jnp.float32)
    w_fuse = 0.1 * jax.random.normal(ks[6], (C, 2 * C, 1), dtype=jnp.float32)
    bn_gamma = 1.0 + 0.1 * jax.random.normal(ks[7], (C,), dtype=jnp.float32)
    bn_beta = 0.1 * jax.random.normal(ks[8], (C,), dtype=jnp.float32)
    bn_mean = 0.1 * jax.random.normal(ks[9], (C,), dtype=jnp.float32)
    bn_var = 1.0 + 0.5 * jax.nn.softplus(
        jax.random.normal(ks[10], (C,), dtype=jnp.float32))

    # l_tile=128 forces two L tiles so the multi-step sum/max accumulator path
    # is exercised even at this small test size.
    out = multi_scale_attention(x, w_se1, w_se2, w_ca1, w_ca2, w_sa, w_fuse,
                                bn_gamma, bn_beta, bn_mean, bn_var, l_tile=128)
    out = jax.block_until_ready(out)

    ref = multi_scale_attention_reference(x, w_se1, w_se2, w_ca1, w_ca2, w_sa,
                                          w_fuse, bn_gamma, bn_beta, bn_mean,
                                          bn_var)
    assert out.shape == (B, C, L)
    err = float(jnp.max(jnp.abs(out - ref)))
    assert jnp.allclose(out, ref, atol=5e-3, rtol=5e-3), f"max abs err {err}"
    print("KERNEL_OK")
</pallas_src>

<mosaic_0001>
module attributes {stable_mosaic.version = 11 : i64} {
  func.func @_pool_gate_kernel(%arg0: i32, %arg1: memref<2x64x128xf32, #tpu.memory_space<vmem>>, %arg2: memref<64x4xf32, #tpu.memory_space<vmem>>, %arg3: memref<4x64xf32, #tpu.memory_space<vmem>>, %arg4: memref<64x4xf32, #tpu.memory_space<vmem>>, %arg5: memref<4x64xf32, #tpu.memory_space<vmem>>, %arg6: memref<2x64xf32, #tpu.memory_space<vmem>>, %arg7: memref<2x64xf32, #tpu.memory_space<vmem>>, %arg8: memref<2x64xf32, #tpu.memory_space<vmem>>, %arg9: memref<2x64xf32, #tpu.memory_space<vmem>>) attributes {dimension_semantics = [#tpu.dimension_semantics<arbitrary>], iteration_bounds = array<i64: 2>, scalar_prefetch = 0 : i64, scratch_operands = 2 : i64, tpu.core_type = #tpu.core_type<tc>, window_params = [{transform_indices = @transform_0, window_bounds = array<i64: 2, 64, 128>}, {pipeline_mode = #tpu.pipeline_mode<synchronous>, transform_indices = @transform_1, window_bounds = array<i64: 64, 4>}, {pipeline_mode = #tpu.pipeline_mode<synchronous>, transform_indices = @transform_2, window_bounds = array<i64: 4, 64>}, {pipeline_mode = #tpu.pipeline_mode<synchronous>, transform_indices = @transform_3, window_bounds = array<i64: 64, 4>}, {pipeline_mode = #tpu.pipeline_mode<synchronous>, transform_indices = @transform_4, window_bounds = array<i64: 4, 64>}, {pipeline_mode = #tpu.pipeline_mode<synchronous>, transform_indices = @transform_5, window_bounds = array<i64: 2, 64>}, {pipeline_mode = #tpu.pipeline_mode<synchronous>, transform_indices = @transform_6, window_bounds = array<i64: 2, 64>}]} {
    %c0_i32 = arith.constant 0 : i32
    %0 = arith.cmpi eq, %arg0, %c0_i32 : i32
    %1 = arith.extui %0 : i1 to i32
    %c0_i32_0 = arith.constant 0 : i32
    %2 = arith.cmpi ne, %1, %c0_i32_0 : i32
    scf.if %2 {
      %cst_13 = arith.constant 0.000000e+00 : f32
      %15 = vector.broadcast %cst_13 : f32 to vector<2x64xf32>
      %c0_14 = arith.constant 0 : index
      %c0_15 = arith.constant 0 : index
      %16 = vector.load %arg8[%c0_14, %c0_15] : memref<2x64xf32, #tpu.memory_space<vmem>>, vector<2x64xf32>
      tpu.vector_store %arg8[%c0_14, %c0_15], %15 {strides = array<i32>} : memref<2x64xf32, #tpu.memory_space<vmem>>, vector<2x64xf32>,
      %cst_16 = arith.constant 0xFF800000 : f32
      %17 = vector.broadcast %cst_16 : f32 to vector<2x64xf32>
      %c0_17 = arith.constant 0 : index
      %c0_18 = arith.constant 0 : index
      %18 = vector.load %arg9[%c0_17, %c0_18] : memref<2x64xf32, #tpu.memory_space<vmem>>, vector<2x64xf32>
      tpu.vector_store %arg9[%c0_17, %c0_18], %17 {strides = array<i32>} : memref<2x64xf32, #tpu.memory_space<vmem>>, vector<2x64xf32>,
    } else {
    }
    %c0 = arith.constant 0 : index
    %c0_1 = arith.constant 0 : index
    %c0_2 = arith.constant 0 : index
    %3 = vector.load %arg1[%c0, %c0_1, %c0_2] : memref<2x64x128xf32, #tpu.memory_space<vmem>>, vector<2x64x128xf32>
    %c0_3 = arith.constant 0 : index
    %c0_4 = arith.constant 0 : index
    %4 = vector.load %arg8[%c0_3, %c0_4] : memref<2x64xf32, #tpu.memory_space<vmem>>, vector<2x64xf32>
    %cst = arith.constant dense<0.000000e+00> : vector<2x64xf32>
    %5 = vector.multi_reduction <add>, %3, %cst [2] : vector<2x64x128xf32> to vector<2x64xf32>
    %6 = arith.addf %4, %5 : vector<2x64xf32>
    %c0_5 = arith.constant 0 : index
    %c0_6 = arith.constant 0 : index
    %7 = vector.load %arg8[%c0_5, %c0_6] : memref<2x64xf32, #tpu.memory_space<vmem>>, vector<2x64xf32>
    tpu.vector_store %arg8[%c0_5, %c0_6], %6 {strides = array<i32>} : memref<2x64xf32, #tpu.memory_space<vmem>>, vector<2x64xf32>,
    %c0_7 = arith.constant 0 : index
    %c0_8 = arith.constant 0 : index
    %8 = vector.load %arg9[%c0_7, %c0_8] : memref<2x64xf32, #tpu.memory_space<vmem>>, vector<2x64xf32>
    %cst_9 = arith.constant dense<0xFF800000> : vector<2x64xf32>
    %9 = vector.multi_reduction <maximumf>, %3, %cst_9 [2] : vector<2x64x128xf32> to vector<2x64xf32>
    %10 = arith.maximumf %8, %9 : vector<2x64xf32>
    %c0_10 = arith.constant 0 : index
    %c0_11 = arith.constant 0 : index
    %11 = vector.load %arg9[%c0_10, %c0_11] : memref<2x64xf32, #tpu.memory_space<vmem>>, vector<2x64xf32>
    tpu.vector_store %arg9[%c0_10, %c0_11], %10 {strides = array<i32>} : memref<2x64xf32, #tpu.memory_space<vmem>>, vector<2x64xf32>,
    %c1_i32 = arith.constant 1 : i32
    %12 = arith.cmpi eq, %arg0, %c1_i32 : i32
    %13 = arith.extui %12 : i1 to i32
    %c0_i32_12 = arith.constant 0 : i32
    %14 = arith.cmpi ne, %13, %c0_i32_12 : i32
    scf.if %14 {
      %c0_13 = arith.constant 0 : index
      %c0_14 = arith.constant 0 : index
      %15 = vector.load %arg8[%c0_13, %c0_14] : memref<2x64xf32, #tpu.memory_space<vmem>>, vector<2x64xf32>
      %cst_15 = arith.constant 3.906250e-03 : f32
      %16 = vector.broadcast %cst_15 : f32 to vector<2x64xf32>
      %17 = arith.mulf %15, %16 : vector<2x64xf32>
      %c0_16 = arith.constant 0 : index
      %c0_17 = arith.constant 0 : index
      %18 = vector.load %arg9[%c0_16, %c0_17] : memref<2x64xf32, #tpu.memory_space<vmem>>, vector<2x64xf32>
      %19 = tpu.concatenate %17, %18 in 0 : vector<2x64xf32>, vector<2x64xf32> -> vector<4x64xf32>
      %c0_18 = arith.constant 0 : index
      %c0_19 = arith.constant 0 : index
      %20 = vector.load %arg2[%c0_18, %c0_19] : memref<64x4xf32, #tpu.memory_space<vmem>>, vector<64x4xf32>
      %cst_20 = arith.constant dense<0.000000e+00> : vector<4x4xf32>
      %21 = tpu.matmul %19, %20, %cst_20 {dimension_numbers = #tpu.dot_dimension_numbers<[1], [0], [0], [1], [0, 0, 1, 1], [], []>} : vector<4x64xf32>, vector<64x4xf32>, vector<4x4xf32> -> vector<4x4xf32>
      %cst_21 = arith.constant 0.000000e+00 : f32
      %22 = vector.broadcast %cst_21 : f32 to vector<4x4xf32>
      %23 = arith.maximumf %21, %22 : vector<4x4xf32>
      %c0_22 = arith.constant 0 : index
      %c0_23 = arith.constant 0 : index
      %24 = vector.load %arg3[%c0_22, %c0_23] : memref<4x64xf32, #tpu.memory_space<vmem>>, vector<4x64xf32>
      %cst_24 = arith.constant dense<0.000000e+00> : vector<4x64xf32>
      %25 = tpu.matmul %23, %24, %cst_24 {dimension_numbers = #tpu.dot_dimension_numbers<[1], [0], [0], [1], [0, 0, 1, 1], [], []>} : vector<4x4xf32>, vector<4x64xf32>, vector<4x64xf32> -> vector<4x64xf32>
      %26 = vector.extract_strided_slice %25 {offsets = [0, 0], sizes = [2, 64], strides = [1, 1]} : vector<4x64xf32> to vector<2x64xf32>
      %27 = vector.extract_strided_slice %25 {offsets = [2, 0], sizes = [2, 64], strides = [1, 1]} : vector<4x64xf32> to vector<2x64xf32>
      %28 = arith.addf %26, %27 : vector<2x64xf32>
      %29 = arith.negf %28 : vector<2x64xf32>
      %30 = math.exp %29 : vector<2x64xf32>
      %cst_25 = arith.constant 1.000000e+00 : f32
      %31 = vector.broadcast %cst_25 : f32 to vector<2x64xf32>
      %32 = arith.addf %31, %30 : vector<2x64xf32>
      %33 = arith.divf %31, %32 : vector<2x64xf32>
      %c0_26 = arith.constant 0 : index
      %c0_27 = arith.constant 0 : index
      %34 = vector.load %arg7[%c0_26, %c0_27] : memref<2x64xf32, #tpu.memory_space<vmem>>, vector<2x64xf32>
      tpu.vector_store %arg7[%c0_26, %c0_27], %33 {strides = array<i32>} : memref<2x64xf32, #tpu.memory_space<vmem>>, vector<2x64xf32>,
      %c0_28 = arith.constant 0 : index
      %c0_29 = arith.constant 0 : index
      %35 = vector.load %arg4[%c0_28, %c0_29] : memref<64x4xf32, #tpu.memory_space<vmem>>, vector<64x4xf32>
      %cst_30 = arith.constant dense<0.000000e+00> : vector<2x4xf32>
      %36 = tpu.matmul %17, %35, %cst_30 {dimension_numbers = #tpu.dot_dimension_numbers<[1], [0], [0], [1], [0, 0, 1, 1], [], []>} : vector<2x64xf32>, vector<64x4xf32>, vector<2x4xf32> -> vector<2x4xf32>
      %cst_31 = arith.constant 0.000000e+00 : f32
      %37 = vector.broadcast %cst_31 : f32 to vector<2x4xf32>
      %38 = arith.maximumf %36, %37 : vector<2x4xf32>
      %c0_32 = arith.constant 0 : index
      %c0_33 = arith.constant 0 : index
      %39 = vector.load %arg5[%c0_32, %c0_33] : memref<4x64xf32, #tpu.memory_space<vmem>>, vector<4x64xf32>
      %cst_34 = arith.constant dense<0.000000e+00> : vector<2x64xf32>
      %40 = tpu.matmul %38, %39, %cst_34 {dimension_numbers = #tpu.dot_dimension_numbers<[1], [0], [0], [1], [0, 0, 1, 1], [], []>} : vector<2x4xf32>, vector<4x64xf32>, vector<2x64xf32> -> vector<2x64xf32>
      %41 = arith.negf %40 : vector<2x64xf32>
      %42 = math.exp %41 : vector<2x64xf32>
      %cst_35 = arith.constant 1.000000e+00 : f32
      %43 = vector.broadcast %cst_35 : f32 to vector<2x64xf32>
      %44 = arith.addf %43, %42 : vector<2x64xf32>
      %45 = arith.divf %43, %44 : vector<2x64xf32>
      %c0_36 = arith.constant 0 : index
      %c0_37 = arith.constant 0 : index
      %46 = vector.load %arg6[%c0_36, %c0_37] : memref<2x64xf32, #tpu.memory_space<vmem>>, vector<2x64xf32>
      tpu.vector_store %arg6[%c0_36, %c0_37], %45 {strides = array<i32>} : memref<2x64xf32, #tpu.memory_space<vmem>>, vector<2x64xf32>,
    } else {
    }
    return
  }
  func.func @transform_0(%arg0: i32) -> (i32, i32, i32) {
    %c0_i32 = arith.constant 0 : i32
    %c0_i32_0 = arith.constant 0 : i32
    %c0_i32_1 = arith.constant 0 : i32
    return %c0_i32, %c0_i32_0, %arg0 : i32, i32, i32
  }
  func.func @transform_1(%arg0: i32) -> (i32, i32) {
    %c0_i32 = arith.constant 0 : i32
    %c0_i32_0 = arith.constant 0 : i32
    %c0_i32_1 = arith.constant 0 : i32
    return %c0_i32, %c0_i32_0 : i32, i32
  }
  func.func @transform_2(%arg0: i32) -> (i32, i32) {
    %c0_i32 = arith.constant 0 : i32
    %c0_i32_0 = arith.constant 0 : i32
    %c0_i32_1 = arith.constant 0 : i32
    return %c0_i32, %c0_i32_0 : i32, i32
  }
  func.func @transform_3(%arg0: i32) -> (i32, i32) {
    %c0_i32 = arith.constant 0 : i32
    %c0_i32_0 = arith.constant 0 : i32
    %c0_i32_1 = arith.constant 0 : i32
    return %c0_i32, %c0_i32_0 : i32, i32
  }
  func.func @transform_4(%arg0: i32) -> (i32, i32) {
    %c0_i32 = arith.constant 0 : i32
    %c0_i32_0 = arith.constant 0 : i32
    %c0_i32_1 = arith.constant 0 : i32
    return %c0_i32, %c0_i32_0 : i32, i32
  }
  func.func @transform_5(%arg0: i32) -> (i32, i32) {
    %c0_i32 = arith.constant 0 : i32
    %c0_i32_0 = arith.constant 0 : i32
    %c0_i32_1 = arith.constant 0 : i32
    return %c0_i32, %c0_i32_0 : i32, i32
  }
  func.func @transform_6(%arg0: i32) -> (i32, i32) {
    %c0_i32 = arith.constant 0 : i32
    %c0_i32_0 = arith.constant 0 : i32
    %c0_i32_1 = arith.constant 0 : i32
    return %c0_i32, %c0_i32_0 : i32, i32
  }
}

</mosaic_0001>

<llo_original>
// kernel: tpu_custom_call.1
$region0: #{tpu_custom_call.1}
  #allocation0 [shape = 'u32[]', space=smem, size = 0x4, offset = 0x4, fixed_abs, tag = 'smem constant byte address 0x4 - core index']
  #allocation1 [shape = 'u32[144,128]{1,0:T(1,128)}', space=vmem, size = 0x12000, scoped, tag = 'internal scratch']
  #allocation2 [shape = 'f32[2,64]{1,0:T(2,128)}', space=vmem, size = 0x400, scoped, tag = 'scratch operand']
  #allocation3 [shape = 'f32[2,64]{1,0:T(2,128)}', space=vmem, size = 0x400, scoped, tag = 'scratch operand']
  %s0 = inlined_call_operand.hbm [shape: f32[2,64,256], index: 0, kind: input, shape index: {}]
  %s1 = inlined_call_operand.vmem [shape: f32[64,4], index: 1, kind: input, shape index: {}]
  %s2 = inlined_call_operand.vmem [shape: f32[4,64], index: 2, kind: input, shape index: {}]
  %s3 = inlined_call_operand.vmem [shape: f32[64,4], index: 3, kind: input, shape index: {}]
  %s4 = inlined_call_operand.vmem [shape: f32[4,64], index: 4, kind: input, shape index: {}]
  %s5 = inlined_call_operand.hbm [shape: f32[2,64], index: 5, kind: output, shape index: {0}]
  %s6 = inlined_call_operand.hbm [shape: f32[2,64], index: 6, kind: output, shape index: {1}]
  %7 = xla_tuple %s5, %s6
  %s8 = sld [smem:[#allocation0]]
  $region73: #{tpu_custom_call.1} parent=0
    _
  %s10 = ssub.s32 1, %s8
  %s11 = scalar_select 0, %s10, %s8
  $region1: #{tpu_custom_call.1} parent=0
    #allocation4 [shape = 'u8[131072]{0}', space=vmem, size = 0x20000, scoped, tag = 'input window, operand 0']
    #allocation5 [shape = 's32[2]{0}', space=sflag, size = 0x8, scoped, tag = 'scoped memory for tpu_custom_call.1']
    #allocation6 [shape = 's32[2]{0}', space=sflag, size = 0x8, scoped, tag = 'scoped memory for tpu_custom_call.1']
    #allocation7 [shape = 'u8[1024]{0}', space=vmem, size = 0x400, scoped, tag = 'output window, operand 0, single buffered']
    #allocation8 [shape = 'u8[1024]{0}', space=vmem, size = 0x400, scoped, tag = 'output window, operand 1, single buffered']
    #allocation9 [shape = 's32[1]{0}', space=sflag, size = 0x4, scoped, tag = 'scoped memory for tpu_custom_call.1']
    %12 = vsyncpa [#allocation5], 0
    %s13 = scalar_lea.sflag [#allocation5], 1
    %14 = vsyncpa %s13, 0
    %15 = vsyncpa [#allocation6], 0
    %16 = vsyncpa [#allocation9], 0
    loop: start=0, step=1, limit=4
    $region2: #{tpu_custom_call.1} parent=1 // loop_pre_header
      _
    $region3: #{tpu_custom_call.1} parent=1 // loop_header
      %s18 = sphi 0, %s22
      %p19 = scmp.ge.s32.totalorder %s18, 4
      %s28 = sphi 0, %s30
      %s31 = sphi 0, %s28
      %s32 = sphi 0, %s31
      %s48 = sphi 0, %s32
      %s52 = sphi 0, %s52
      %s54 = sphi 0, %s52
      %s55 = sphi 0, %s54
      %s69 = sphi 0, %s55
      %s73 = sphi 0, %s73
      %s75 = sphi 0, %s73
      %s76 = sphi 0, %s75
      %s90 = sphi 0, %s76
      %s94 = sphi 0, %s94
      %s96 = sphi 0, %s94
      %s97 = sphi 0, %s96
      %s111 = sphi 0, %s97
      %s115 = sphi 0, %s115
      %s117 = sphi 0, %s115
      %s118 = sphi 0, %s117
      %s132 = sphi 0, %s118
      %s136 = sphi 0, %s136
      %s138 = sphi 0, %s136
      %s139 = sphi 0, %s138
      %s153 = sphi 0, %s139
      %s157 = sphi 0, %s157
      %s159 = sphi 0, %s157
      %s160 = sphi 0, %s159
      %s174 = sphi 0, %s160
    $region4: #{tpu_custom_call.1} parent=1 // loop_header_branch
      %21 = sbr.rel (%p19) target = $region8
    $region5: #{tpu_custom_call.1} parent=1 // loop_body
      %s23 = ssub.s32 %s18, 1
      %s24 = ssub.s32 %s18, 2
      %s25 = sadd.s32 %s18, 1
      %s26 = ssub.s32 %s18, %s25
      %p27 = scmp.eq.s32.totalorder %s26, 0
      %s29 = sadd.s32 %s28, 1
      %s30 = scalar_select %p27, %s28, %s29
      %p33 = pneg %p27
      %p34 = scmp.eq.s32.totalorder %s18, 1
      %p35 = por %p33, %p34
      %p36 = scmp.ne.s32.totalorder %s28, %s31
      %p37 = scmp.eq.s32.totalorder %s18, 0
      %p38 = por %p36, %p37
      %p39 = scmp.ne.s32.totalorder %s28, %s31
      %p40 = scmp.eq.s32.totalorder %s23, 1
      %p41 = por %p39, %p40
      %p42 = scmp.ne.s32.totalorder %s31, %s32
      %p43 = scmp.eq.s32.totalorder %s23, 0
      %p44 = por %p42, %p43
      %p45 = scmp.ne.s32.totalorder %s31, %s32
      %p46 = scmp.eq.s32.totalorder %s24, 1
      %p47 = por %p45, %p46
      %p49 = scmp.ne.s32.totalorder %s32, %s48
      %p50 = scmp.eq.s32.totalorder %s24, 0
      %p51 = por %p49, %p50
      %s53 = sadd.s32 %s52, 1
      %p56 = scmp.eq.s32.totalorder %s18, 1
      %p57 = scmp.ne.s32.totalorder %s52, %s54
      %p58 = scmp.eq.s32.totalorder %s18, 0
      %p59 = por %p57, %p58
      %p60 = scmp.ne.s32.totalorder %s52, %s54
      %p61 = scmp.eq.s32.totalorder %s23, 1
      %p62 = por %p60, %p61
      %p63 = scmp.ne.s32.totalorder %s54, %s55
      %p64 = scmp.eq.s32.totalorder %s23, 0
      %p65 = por %p63, %p64
      %p66 = scmp.ne.s32.totalorder %s54, %s55
      %p67 = scmp.eq.s32.totalorder %s24, 1
      %p68 = por %p66, %p67
      %p70 = scmp.ne.s32.totalorder %s55, %s69
      %p71 = scmp.eq.s32.totalorder %s24, 0
      %p72 = por %p70, %p71
      %s74 = sadd.s32 %s73, 1
      %p77 = scmp.eq.s32.totalorder %s18, 1
      %p78 = scmp.ne.s32.totalorder %s73, %s75
      %p79 = scmp.eq.s32.totalorder %s18, 0
      %p80 = por %p78, %p79
      %p81 = scmp.ne.s32.totalorder %s73, %s75
      %p82 = scmp.eq.s32.totalorder %s23, 1
      %p83 = por %p81, %p82
      %p84 = scmp.ne.s32.totalorder %s75, %s76
      %p85 = scmp.eq.s32.totalorder %s23, 0
      %p86 = por %p84, %p85
      %p87 = scmp.ne.s32.totalorder %s75, %s76
      %p88 = scmp.eq.s32.totalorder %s24, 1
      %p89 = por %p87, %p88
      %p91 = scmp.ne.s32.totalorder %s76, %s90
      %p92 = scmp.eq.s32.totalorder %s24, 0
      %p93 = por %p91, %p92
      %s95 = sadd.s32 %s94, 1
      %p98 = scmp.eq.s32.totalorder %s18, 1
      %p99 = scmp.ne.s32.totalorder %s94, %s96
      %p100 = scmp.eq.s32.totalorder %s18, 0
      %p101 = por %p99, %p100
      %p102 = scmp.ne.s32.totalorder %s94, %s96
      %p103 = scmp.eq.s32.totalorder %s23, 1
      %p104 = por %p102, %p103
      %p105 = scmp.ne.s32.totalorder %s96, %s97
      %p106 = scmp.eq.s32.totalorder %s23, 0
      %p107 = por %p105, %p106
      %p108 = scmp.ne.s32.totalorder %s96, %s97
      %p109 = scmp.eq.s32.totalorder %s24, 1
      %p110 = por %p108, %p109
      %p112 = scmp.ne.s32.totalorder %s97, %s111
      %p113 = scmp.eq.s32.totalorder %s24, 0
      %p114 = por %p112, %p113
      %s116 = sadd.s32 %s115, 1
      %p119 = scmp.eq.s32.totalorder %s18, 1
      %p120 = scmp.ne.s32.totalorder %s115, %s117
      %p121 = scmp.eq.s32.totalorder %s18, 0
      %p122 = por %p120, %p121
      %p123 = scmp.ne.s32.totalorder %s115, %s117
      %p124 = scmp.eq.s32.totalorder %s23, 1
      %p125 = por %p123, %p124
      %p126 = scmp.ne.s32.totalorder %s117, %s118
      %p127 = scmp.eq.s32.totalorder %s23, 0
      %p128 = por %p126, %p127
      %p129 = scmp.ne.s32.totalorder %s117, %s118
      %p130 = scmp.eq.s32.totalorder %s24, 1
      %p131 = por %p129, %p130
      %p133 = scmp.ne.s32.totalorder %s118, %s132
      %p134 = scmp.eq.s32.totalorder %s24, 0
      %p135 = por %p133, %p134
      %s137 = sadd.s32 %s136, 1
      %p140 = scmp.eq.s32.totalorder %s18, 1
      %p141 = scmp.ne.s32.totalorder %s136, %s138
      %p142 = scmp.eq.s32.totalorder %s18, 0
      %p143 = por %p141, %p142
      %p144 = scmp.ne.s32.totalorder %s136, %s138
      %p145 = scmp.eq.s32.totalorder %s23, 1
      %p146 = por %p144, %p145
      %p147 = scmp.ne.s32.totalorder %s138, %s139
      %p148 = scmp.eq.s32.totalorder %s23, 0
      %p149 = por %p147, %p148
      %p150 = scmp.ne.s32.totalorder %s138, %s139
      %p151 = scmp.eq.s32.totalorder %s24, 1
      %p152 = por %p150, %p151
      %p154 = scmp.ne.s32.totalorder %s139, %s153
      %p155 = scmp.eq.s32.totalorder %s24, 0
      %p156 = por %p154, %p155
      %s158 = sadd.s32 %s157, 1
      %p161 = scmp.eq.s32.totalorder %s18, 1
      %p162 = scmp.ne.s32.totalorder %s157, %s159
      %p163 = scmp.eq.s32.totalorder %s18, 0
      %p164 = por %p162, %p163
      %p165 = scmp.ne.s32.totalorder %s157, %s159
      %p166 = scmp.eq.s32.totalorder %s23, 1
      %p167 = por %p165, %p166
      %p168 = scmp.ne.s32.totalorder %s159, %s160
      %p169 = scmp.eq.s32.totalorder %s23, 0
      %p170 = por %p168, %p169
      %p171 = scmp.ne.s32.totalorder %s159, %s160
      %p172 = scmp.eq.s32.totalorder %s24, 1
      %p173 = por %p171, %p172
      %p175 = scmp.ne.s32.totalorder %s160, %s174
      %p176 = scmp.eq.s32.totalorder %s24, 0
      %p177 = por %p175, %p176
      %p178 = scmp.le.s32.totalorder 1, %s18
      %p179 = scmp.lt.s32.totalorder %s18, 3
      %p180 = pnand %p178, %p179
      %p181 = pneg %p180
      // Predicated region
      $region9: #{tpu_custom_call.1} parent=5 // pred_check
        _
      $region10: #{tpu_custom_call.1} parent=5 // pred_check_branch
        %183 = sbr.rel (%p180) target = $region12
      $region11: #{tpu_custom_call.1} parent=5 // pred_region
        %s184 = ssub.s32 %s18, 1
        // Predicated region
        $region13: #{tpu_custom_call.1} parent=11 // pred_check
          %p185 = pneg %p65
        $region14: #{tpu_custom_call.1} parent=11 // pred_check_branch
          %187 = sbr.rel (%p185) target = $region16
        $region15: #{tpu_custom_call.1} parent=11 // pred_region
          _
        $region16: #{tpu_custom_call.1} parent=11 // pred_fallthru
          _
        // Predicated region
        $region17: #{tpu_custom_call.1} parent=11 // pred_check
          %p188 = pneg %p86
        $region18: #{tpu_custom_call.1} parent=11 // pred_check_branch
          %190 = sbr.rel (%p188) target = $region20
        $region19: #{tpu_custom_call.1} parent=11 // pred_region
          _
        $region20: #{tpu_custom_call.1} parent=11 // pred_fallthru
          _
        // Predicated region
        $region21: #{tpu_custom_call.1} parent=11 // pred_check
          %p191 = pneg %p107
        $region22: #{tpu_custom_call.1} parent=11 // pred_check_branch
          %193 = sbr.rel (%p191) target = $region24
        $region23: #{tpu_custom_call.1} parent=11 // pred_region
          _
        $region24: #{tpu_custom_call.1} parent=11 // pred_fallthru
          _
        // Predicated region
        $region25: #{tpu_custom_call.1} parent=11 // pred_check
          %p194 = pneg %p128
        $region26: #{tpu_custom_call.1} parent=11 // pred_check_branch
          %196 = sbr.rel (%p194) target = $region28
        $region27: #{tpu_custom_call.1} parent=11 // pred_region
          _
        $region28: #{tpu_custom_call.1} parent=11 // pred_fallthru
          _
      $region12: #{tpu_custom_call.1} parent=5 // pred_fallthru
        _
      %p197 = scmp.lt.s32.totalorder %s18, 2
      // Predicated region
      $region29: #{tpu_custom_call.1} parent=5 // pred_check
        %p198 = pneg %p197
      $region30: #{tpu_custom_call.1} parent=5 // pred_check_branch
        %200 = sbr.rel (%p198) target = $region32
      $region31: #{tpu_custom_call.1} parent=5 // pred_region
        // Predicated region
        $region33: #{tpu_custom_call.1} parent=31 // pred_check
          %p201 = pneg %p38
        $region34: #{tpu_custom_call.1} parent=31 // pred_check_branch
          %203 = sbr.rel (%p201) target = $region36
        $region35: #{tpu_custom_call.1} parent=31 // pred_region
          %s204 = sand.u32 %s28, 1
          %s205 = scalar_lea.sflag [#allocation5], %s204
          %s206 = sand.u32 %s28, 1
          %s207 = smul.addr %s206, 128
          %s208 = scalar_lea.vmem [#allocation4], %s207
          %s210 = ssub.s32 2048, 2048
          %211 = vsyncadd %s205, %s210
          %s212 = smul.addr %s18, 128
          %s213 = scalar_lea.hbm %s0, %s212
          %s214 = sshll.u32 %s208, 4
          %s215 = int_to_ptr.vmem [resolvable:$true] %s214
          %220 = dma.hbm_to_vmem [thread:$0]  %s213, 2048, %s215, %s205, 256, 128, 8
        $region36: #{tpu_custom_call.1} parent=31 // pred_fallthru
          _
      $region32: #{tpu_custom_call.1} parent=5 // pred_fallthru
        _
      %p221 = scmp.le.s32.totalorder 1, %s18
      %p222 = scmp.lt.s32.totalorder %s18, 3
      %p223 = pnand %p221, %p222
      %p224 = pneg %p223
      // Predicated region
      $region37: #{tpu_custom_call.1} parent=5 // pred_check
        _
      $region38: #{tpu_custom_call.1} parent=5 // pred_check_branch
        %226 = sbr.rel (%p223) target = $region40
      $region39: #{tpu_custom_call.1} parent=5 // pred_region
        %s227 = ssub.s32 %s18, 1
        %s228 = sand.u32 %s31, 1
        %s229 = scalar_lea.sflag [#allocation5], %s228
        %s230 = sand.u32 %s31, 1
        %s231 = smul.addr %s230, 128
        %s232 = scalar_lea.vmem [#allocation4], %s231
        // Predicated region
        $region41: #{tpu_custom_call.1} parent=39 // pred_check
          %p233 = pneg %p44
        $region42: #{tpu_custom_call.1} parent=39 // pred_check_branch
          %235 = sbr.rel (%p233) target = $region44
        $region43: #{tpu_custom_call.1} parent=39 // pred_region
          %236 = dma.done %s229, 2048
        $region44: #{tpu_custom_call.1} parent=39 // pred_fallthru
          _
        %s237 = sand.u32 %s31, 1
        %s238 = scalar_lea.sflag [#allocation5], %s237
        %s239 = sand.u32 %s31, 1
        %s240 = smul.addr %s239, 128
        %s241 = scalar_lea.vmem [#allocation4], %s240
        %p242 = pneg %p44
        %p243 = pneg %p41
        %p244 = pneg %p65
        %p245 = pneg %p62
        %p246 = pneg %p86
        %p247 = pneg %p83
        %p248 = pneg %p107
        %p249 = pneg %p104
        %p250 = pneg %p128
        %p251 = pneg %p125
        %p252 = pneg %p149
        %p253 = pneg %p146
        %p254 = pneg %p170
        %p255 = pneg %p167
        %p256 = scmp.eq.s32.totalorder %s23, 0
        // Predicated region
        $region45: #{tpu_custom_call.1} parent=39 // pred_check
          %p257 = pneg %p256
        $region46: #{tpu_custom_call.1} parent=39 // pred_check_branch
          %259 = sbr.rel (%p257) target = $region48
        $region47: #{tpu_custom_call.1} parent=39 // pred_region
          %vm260 = vcmask 517120
          %261 = vst.msk [vmem:[#allocation2] sm:$0x3] %vm260, 0.0
          %262 = vst.msk [vmem:[#allocation3] sm:$0x3] %vm260, -inf
        $region48: #{tpu_custom_call.1} parent=39 // pred_fallthru
          _
        %v263 = vld [vmem:[%s232] sm:$0xff]
        %v264 = vld [vmem:[%s232 + $0x8] sm:$0xff]
        %v265 = vld [vmem:[%s232 + $0x10] sm:$0xff]
        %v266 = vld [vmem:[%s232 + $0x18] sm:$0xff]
        %v267 = vld [vmem:[%s232 + $0x20] sm:$0xff]
        %v268 = vld [vmem:[%s232 + $0x28] sm:$0xff]
        %v269 = vld [vmem:[%s232 + $0x30] sm:$0xff]
        %v270 = vld [vmem:[%s232 + $0x38] sm:$0xff]
        %v271 = vld [vmem:[%s232 + $0x40] sm:$0xff]
        %v272 = vld [vmem:[%s232 + $0x48] sm:$0xff]
        %v273 = vld [vmem:[%s232 + $0x50] sm:$0xff]
        %v274 = vld [vmem:[%s232 + $0x58] sm:$0xff]
        %v275 = vld [vmem:[%s232 + $0x60] sm:$0xff]
        %v276 = vld [vmem:[%s232 + $0x68] sm:$0xff]
        %v277 = vld [vmem:[%s232 + $0x70] sm:$0xff]
        %v278 = vld [vmem:[%s232 + $0x78] sm:$0xff]
        %v279 = vld [vmem:[#allocation2] sm:$0x3]
        %280 = vadd.xlane.f32.xlu0 %v263
        %v281 = vpop.xlane.xlu0 %280
        %282 = vadd.xlane.f32.xlu0 %v264
        %v283 = vpop.xlane.xlu0 %282
        %284 = vadd.xlane.f32.xlu0 %v265
        %v285 = vpop.xlane.xlu0 %284
        %286 = vadd.xlane.f32.xlu0 %v266
        %v287 = vpop.xlane.xlu0 %286
        %288 = vadd.xlane.f32.xlu0 %v267
        %v289 = vpop.xlane.xlu0 %288
        %290 = vadd.xlane.f32.xlu0 %v268
        %v291 = vpop.xlane.xlu0 %290
        %292 = vadd.xlane.f32.xlu0 %v269
        %v293 = vpop.xlane.xlu0 %292
        %294 = vadd.xlane.f32.xlu0 %v270
        %v295 = vpop.xlane.xlu0 %294
        %296 = vadd.xlane.f32.xlu0 %v271
        %v297 = vpop.xlane.xlu0 %296
        %298 = vadd.xlane.f32.xlu0 %v272
        %v299 = vpop.xlane.xlu0 %298
        %300 = vadd.xlane.f32.xlu0 %v273
        %v301 = vpop.xlane.xlu0 %300
        %302 = vadd.xlane.f32.xlu0 %v274
        %v303 = vpop.xlane.xlu0 %302
        %304 = vadd.xlane.f32.xlu0 %v275
        %v305 = vpop.xlane.xlu0 %304
        %306 = vadd.xlane.f32.xlu0 %v276
        %v307 = vpop.xlane.xlu0 %306
        %308 = vadd.xlane.f32.xlu0 %v277
        %v309 = vpop.xlane.xlu0 %308
        %310 = vadd.xlane.f32.xlu0 %v278
        %v311 = vpop.xlane.xlu0 %310
        %v328 = vlaneseq
        %v329 = vand.u32 %v328, 127
        %v330 = vlaneseq
        %v331 = vshrl.u32 %v330, 7
        %v332 = vsub.s32 %v329, %v331
        %v333 = vrot.slane %v281, %v332
        %v334 = vadd.s32 %v329, 4294967288
        %v335 = vlaneseq
        %v336 = vshrl.u32 %v335, 7
        %v337 = vsub.s32 %v334, %v336
        %v338 = vrot.slane %v283, %v337
        %vm339 = vcmask 130112
        %v340 = vsel %vm339, %v338, %v333
        %v341 = vadd.s32 %v329, 4294967280
        %v342 = vlaneseq
        %v343 = vshrl.u32 %v342, 7
        %v344 = vsub.s32 %v341, %v343
        %v345 = vrot.slane %v285, %v344
        %vm346 = vcmask 195712
        %v347 = vsel %vm346, %v345, %v340
        %v348 = vadd.s32 %v329, 4294967272
        %v349 = vlaneseq
        %v350 = vshrl.u32 %v349, 7
        %v351 = vsub.s32 %v348, %v350
        %v352 = vrot.slane %v287, %v351
        %vm353 = vcmask 261312
        %v354 = vsel %vm353, %v352, %v347
        %v355 = vadd.s32 %v329, 4294967264
        %v356 = vlaneseq
        %v357 = vshrl.u32 %v356, 7
        %v358 = vsub.s32 %v355, %v357
        %v359 = vrot.slane %v289, %v358
        %vm360 = vcmask 326912
        %v361 = vsel %vm360, %v359, %v354
        %v362 = vadd.s32 %v329, 4294967256
        %v363 = vlaneseq
        %v364 = vshrl.u32 %v363, 7
        %v365 = vsub.s32 %v362, %v364
        %v366 = vrot.slane %v291, %v365
        %vm367 = vcmask 392512
        %v368 = vsel %vm367, %v366, %v361
        %v369 = vadd.s32 %v329, 4294967248
        %v370 = vlaneseq
        %v371 = vshrl.u32 %v370, 7
        %v372 = vsub.s32 %v369, %v371
        %v373 = vrot.slane %v293, %v372
        %vm374 = vcmask 458112
        %v375 = vsel %vm374, %v373, %v368
        %v376 = vadd.s32 %v329, 4294967240
        %v377 = vlaneseq
        %v378 = vshrl.u32 %v377, 7
        %v379 = vsub.s32 %v376, %v378
        %v380 = vrot.slane %v295, %v379
        %vm381 = vcmask 523712
        %v382 = vsel %vm381, %v380, %v375
        %v383 = vlaneseq
        %v384 = vshrl.u32 %v383, 7
        %v385 = vsub.s32 %v329, %v384
        %v386 = vrot.slane %v297, %v385
        %v387 = vlaneseq
        %v388 = vshrl.u32 %v387, 7
        %v389 = vsub.s32 %v334, %v388
        %v390 = vrot.slane %v299, %v389
        %v391 = vsel %vm339, %v390, %v386
        %v392 = vlaneseq
        %v393 = vshrl.u32 %v392, 7
        %v394 = vsub.s32 %v341, %v393
        %v395 = vrot.slane %v301, %v394
        %v396 = vsel %vm346, %v395, %v391
        %v397 = vlaneseq
        %v398 = vshrl.u32 %v397, 7
        %v399 = vsub.s32 %v348, %v398
        %v400 = vrot.slane %v303, %v399
        %v401 = vsel %vm353, %v400, %v396
        %v402 = vlaneseq
        %v403 = vshrl.u32 %v402, 7
        %v404 = vsub.s32 %v355, %v403
        %v405 = vrot.slane %v305, %v404
        %v406 = vsel %vm360, %v405, %v401
        %v407 = vlaneseq
        %v408 = vshrl.u32 %v407, 7
        %v409 = vsub.s32 %v362, %v408
        %v410 = vrot.slane %v307, %v409
        %v411 = vsel %vm367, %v410, %v406
        %v412 = vlaneseq
        %v413 = vshrl.u32 %v412, 7
        %v414 = vsub.s32 %v369, %v413
        %v415 = vrot.slane %v309, %v414
        %v416 = vsel %vm374, %v415, %v411
        %v417 = vlaneseq
        %v418 = vshrl.u32 %v417, 7
        %v419 = vsub.s32 %v376, %v418
        %v420 = vrot.slane %v311, %v419
        %v421 = vsel %vm381, %v420, %v416
        %vm422 = vcmask 1041409
        %v423 = vsel %vm422, %v421, %v382
        %v425 = vadd.f32 %v279, %v423
        %vm426 = vcmask 517120
        %427 = vst.msk [vmem:[#allocation2] sm:$0x3] %vm426, %v425
        %v428 = vld [vmem:[#allocation3] sm:$0x3]
        %429 = vmax.xlane.f32.xlu0 %v263
        %v430 = vpop.xlane.xlu0 %429
        %431 = vmax.xlane.f32.xlu0 %v264
        %v432 = vpop.xlane.xlu0 %431
        %433 = vmax.xlane.f32.xlu0 %v265
        %v434 = vpop.xlane.xlu0 %433
        %435 = vmax.xlane.f32.xlu0 %v266
        %v436 = vpop.xlane.xlu0 %435
        %437 = vmax.xlane.f32.xlu0 %v267
        %v438 = vpop.xlane.xlu0 %437
        %439 = vmax.xlane.f32.xlu0 %v268
        %v440 = vpop.xlane.xlu0 %439
        %441 = vmax.xlane.f32.xlu0 %v269
        %v442 = vpop.xlane.xlu0 %441
        %443 = vmax.xlane.f32.xlu0 %v270
        %v444 = vpop.xlane.xlu0 %443
        %445 = vmax.xlane.f32.xlu0 %v271
        %v446 = vpop.xlane.xlu0 %445
        %447 = vmax.xlane.f32.xlu0 %v272
        %v448 = vpop.xlane.xlu0 %447
        %449 = vmax.xlane.f32.xlu0 %v273
        %v450 = vpop.xlane.xlu0 %449
        %451 = vmax.xlane.f32.xlu0 %v274
        %v452 = vpop.xlane.xlu0 %451
        %453 = vmax.xlane.f32.xlu0 %v275
        %v454 = vpop.xlane.xlu0 %453
        %455 = vmax.xlane.f32.xlu0 %v276
        %v456 = vpop.xlane.xlu0 %455
        %457 = vmax.xlane.f32.xlu0 %v277
        %v458 = vpop.xlane.xlu0 %457
        %459 = vmax.xlane.f32.xlu0 %v278
        %v460 = vpop.xlane.xlu0 %459
        %v477 = vlaneseq
        %v478 = vshrl.u32 %v477, 7
        %v479 = vsub.s32 %v329, %v478
        %v480 = vrot.slane %v430, %v479
        %v481 = vlaneseq
        %v482 = vshrl.u32 %v481, 7
        %v483 = vsub.s32 %v334, %v482
        %v484 = vrot.slane %v432, %v483
        %v485 = vsel %vm339, %v484, %v480
        %v486 = vlaneseq
        %v487 = vshrl.u32 %v486, 7
        %v488 = vsub.s32 %v341, %v487
        %v489 = vrot.slane %v434, %v488
        %v490 = vsel %vm346, %v489, %v485
        %v491 = vlaneseq
        %v492 = vshrl.u32 %v491, 7
        %v493 = vsub.s32 %v348, %v492
        %v494 = vrot.slane %v436, %v493
        %v495 = vsel %vm353, %v494, %v490
        %v496 = vlaneseq
        %v497 = vshrl.u32 %v496, 7
        %v498 = vsub.s32 %v355, %v497
        %v499 = vrot.slane %v438, %v498
        %v500 = vsel %vm360, %v499, %v495
        %v501 = vlaneseq
        %v502 = vshrl.u32 %v501, 7
        %v503 = vsub.s32 %v362, %v502
        %v504 = vrot.slane %v440, %v503
        %v505 = vsel %vm367, %v504, %v500
        %v506 = vlaneseq
        %v507 = vshrl.u32 %v506, 7
        %v508 = vsub.s32 %v369, %v507
        %v509 = vrot.slane %v442, %v508
        %v510 = vsel %vm374, %v509, %v505
        %v511 = vlaneseq
        %v512 = vshrl.u32 %v511, 7
        %v513 = vsub.s32 %v376, %v512
        %v514 = vrot.slane %v444, %v513
        %v515 = vsel %vm381, %v514, %v510
        %v516 = vlaneseq
        %v517 = vshrl.u32 %v516, 7
        %v518 = vsub.s32 %v329, %v517
        %v519 = vrot.slane %v446, %v518
        %v520 = vlaneseq
        %v521 = vshrl.u32 %v520, 7
        %v522 = vsub.s32 %v334, %v521
        %v523 = vrot.slane %v448, %v522
        %v524 = vsel %vm339, %v523, %v519
        %v525 = vlaneseq
        %v526 = vshrl.u32 %v525, 7
        %v527 = vsub.s32 %v341, %v526
        %v528 = vrot.slane %v450, %v527
        %v529 = vsel %vm346, %v528, %v524
        %v530 = vlaneseq
        %v531 = vshrl.u32 %v530, 7
        %v532 = vsub.s32 %v348, %v531
        %v533 = vrot.slane %v452, %v532
        %v534 = vsel %vm353, %v533, %v529
        %v535 = vlaneseq
        %v536 = vshrl.u32 %v535, 7
        %v537 = vsub.s32 %v355, %v536
        %v538 = vrot.slane %v454, %v537
        %v539 = vsel %vm360, %v538, %v534
        %v540 = vlaneseq
        %v541 = vshrl.u32 %v540, 7
        %v542 = vsub.s32 %v362, %v541
        %v543 = vrot.slane %v456, %v542
        %v544 = vsel %vm367, %v543, %v539
        %v545 = vlaneseq
        %v546 = vshrl.u32 %v545, 7
        %v547 = vsub.s32 %v369, %v546
        %v548 = vrot.slane %v458, %v547
        %v549 = vsel %vm374, %v548, %v544
        %v550 = vlaneseq
        %v551 = vshrl.u32 %v550, 7
        %v552 = vsub.s32 %v376, %v551
        %v553 = vrot.slane %v460, %v552
        %v554 = vsel %vm381, %v553, %v549
        %v555 = vsel %vm422, %v554, %v515
        %v557 = vmax.f32 %v428, %v555
        %558 = vst.msk [vmem:[#allocation3] sm:$0x3] %vm426, %v557
        %p559 = scmp.eq.s32.totalorder %s23, 1
        // Predicated region
        $region49: #{tpu_custom_call.1} parent=39 // pred_check
          %p560 = pneg %p559
        $region50: #{tpu_custom_call.1} parent=39 // pred_check_branch
          %562 = sbr.rel (%p560) target = $region52
        $region51: #{tpu_custom_call.1} parent=39 // pred_region
          %v563 = vld [vmem:[#allocation2] sm:$0x3]
          %v564 = vmul.f32 %v563, 0.00390625
          %v565 = vld [vmem:[#allocation3] sm:$0x3]
          %v567 = vrot.slane %v565, 6
          %vm569 = vcmask 1041408
          %v570 = vsel %vm569, %v564, %v567
          %v571 = vld [vmem:[%s1] sm:$0xff]
          %v572 = vld [vmem:[%s1 + $0x8] sm:$0xff]
          %v573 = vld [vmem:[%s1 + $0x10] sm:$0xff]
          %v574 = vld [vmem:[%s1 + $0x18] sm:$0xff]
          %v575 = vld [vmem:[%s1 + $0x20] sm:$0xff]
          %v576 = vld [vmem:[%s1 + $0x28] sm:$0xff]
          %v577 = vld [vmem:[%s1 + $0x30] sm:$0xff]
          %v578 = vld [vmem:[%s1 + $0x38] sm:$0xff]
          %vm579 = vcmask 523264
          %v581 = vsel %vm579, %v570, 0
          %583 = vmatprep.subr.mxu0 0.0
          %584 = vmatpush1.msra.mxu0 %v571
          %585 = vmatprep.subr.mxu0 0.0
          %586 = vmatpush1.msra.mxu0 %v572
          %587 = vmatprep.subr.mxu0 0.0
          %588 = vmatpush1.msra.mxu0 %v573
          %589 = vmatprep.subr.mxu0 0.0
          %590 = vmatpush1.msra.mxu0 %v574
          %591 = vmatprep.subr.mxu0 0.0
          %592 = vmatpush1.msra.mxu0 %v575
          %593 = vmatprep.subr.mxu0 0.0
          %594 = vmatpush1.msra.mxu0 %v576
          %595 = vmatprep.subr.mxu0 0.0
          %596 = vmatpush1.msra.mxu0 %v577
          %597 = vmatprep.subr.mxu0 0.0
          %598 = vmatpush1.msra.mxu0 %v578
          %599 = vmatprep.subr.mxu0 0.0
          %600 = vmatpush1.msra.mxu0 0.0
          %601 = vmatprep.subr.mxu0 0.0
          %602 = vmatpush1.msra.mxu0 0.0
          %603 = vmatprep.subr.mxu0 0.0
          %604 = vmatpush1.msra.mxu0 0.0
          %605 = vmatprep.subr.mxu0 0.0
          %606 = vmatpush1.msra.mxu0 0.0
          %607 = vmatprep.subr.mxu0 0.0
          %608 = vmatpush1.msra.mxu0 0.0
          %609 = vmatprep.subr.mxu0 0.0
          %610 = vmatpush1.msra.mxu0 0.0
          %611 = vmatprep.subr.mxu0 0.0
          %612 = vmatpush1.msra.mxu0 0.0
          %613 = vmatprep.subr.mxu0 0.0
          %614 = vmatpush1.msra.mxu0 0.0
          %615 = vmatprep.subr.mxu0 0.0
          %616 = vmatpush1.msra.mxu0 0.0
          %617 = vmatprep.subr.mxu0 0.0
          %618 = vmatpush1.msra.mxu0 0.0
          %619 = vmatprep.subr.mxu0 0.0
          %620 = vmatpush1.msra.mxu0 0.0
          %621 = vmatprep.subr.mxu0 0.0
          %622 = vmatpush1.msra.mxu0 0.0
          %623 = vmatprep.subr.mxu0 0.0
          %624 = vmatpush1.msra.mxu0 0.0
          %625 = vmatprep.subr.mxu0 0.0
          %626 = vmatpush1.msra.mxu0 0.0
          %627 = vmatprep.subr.mxu0 0.0
          %628 = vmatpush1.msra.mxu0 0.0
          %629 = vmatprep.subr.mxu0 0.0
          %630 = vmatpush1.msra.mxu0 0.0
          %631 = vmatprep.subr.mxu0 0.0
          %632 = vmatpush1.msra.mxu0 0.0
          %633 = vmatprep.subr.mxu0 0.0
          %634 = vmatpush1.msra.mxu0 0.0
          %635 = vmatprep.subr.mxu0 0.0
          %636 = vmatpush1.msra.mxu0 0.0
          %637 = vmatprep.subr.mxu0 0.0
          %638 = vmatpush1.msra.mxu0 0.0
          %639 = vmatprep.subr.mxu0 0.0
          %640 = vmatpush1.msra.mxu0 0.0
          %641 = vmatprep.subr.mxu0 0.0
          %642 = vmatpush1.msra.mxu0 0.0
          %643 = vmatprep.subr.mxu0 0.0
          %644 = vmatpush1.msra.mxu0 0.0
          %645 = vmatprep.subr.mxu0 0.0
          %646 = vmatpush1.msra.mxu0 0.0
          %647 = vmatprep.mubr.f32.mxu0 0.0
          %648 = vmatmul.mubr.f32.gmra.mrb[0].mxu0 %v581
          %v649 = vpop.f32.mrb[0].mxu0
          %v650 = vadd.f32 0.0, %v649
          %v651 = vpop.f32.mrb[0].mxu0
          %652 = vdwg.mxu0
          %v653 = vmax.f32 %v650, 0.0
          %v654 = vld [vmem:[%s2] sm:$0xf]
          %vm655 = vcmask 31744
          %v657 = vsel %vm655, %v653, 0
          %vm659 = vcmask 1043456
          %v661 = vsel %vm659, %v654, 0
          %663 = vmatprep.subr.mxu0 0.0
          %664 = vmatpush1.msra.mxu0 %v661
          %665 = vmatprep.subr.mxu0 0.0
          %666 = vmatpush1.msra.mxu0 0.0
          %667 = vmatprep.subr.mxu0 0.0
          %668 = vmatpush1.msra.mxu0 0.0
          %669 = vmatprep.subr.mxu0 0.0
          %670 = vmatpush1.msra.mxu0 0.0
          %671 = vmatprep.subr.mxu0 0.0
          %672 = vmatpush1.msra.mxu0 0.0
          %673 = vmatprep.subr.mxu0 0.0
          %674 = vmatpush1.msra.mxu0 0.0
          %675 = vmatprep.subr.mxu0 0.0
          %676 = vmatpush1.msra.mxu0 0.0
          %677 = vmatprep.subr.mxu0 0.0
          %678 = vmatpush1.msra.mxu0 0.0
          %679 = vmatprep.subr.mxu0 0.0
          %680 = vmatpush1.msra.mxu0 0.0
          %681 = vmatprep.subr.mxu0 0.0
          %682 = vmatpush1.msra.mxu0 0.0
          %683 = vmatprep.subr.mxu0 0.0
          %684 = vmatpush1.msra.mxu0 0.0
          %685 = vmatprep.subr.mxu0 0.0
          %686 = vmatpush1.msra.mxu0 0.0
          %687 = vmatprep.subr.mxu0 0.0
          %688 = vmatpush1.msra.mxu0 0.0
          %689 = vmatprep.subr.mxu0 0.0
          %690 = vmatpush1.msra.mxu0 0.0
          %691 = vmatprep.subr.mxu0 0.0
          %692 = vmatpush1.msra.mxu0 0.0
          %693 = vmatprep.subr.mxu0 0.0
          %694 = vmatpush1.msra.mxu0 0.0
          %695 = vmatprep.subr.mxu0 0.0
          %696 = vmatpush1.msra.mxu0 0.0
          %697 = vmatprep.subr.mxu0 0.0
          %698 = vmatpush1.msra.mxu0 0.0
          %699 = vmatprep.subr.mxu0 0.0
          %700 = vmatpush1.msra.mxu0 0.0
          %701 = vmatprep.subr.mxu0 0.0
          %702 = vmatpush1.msra.mxu0 0.0
          %703 = vmatprep.subr.mxu0 0.0
          %704 = vmatpush1.msra.mxu0 0.0
          %705 = vmatprep.subr.mxu0 0.0
          %706 = vmatpush1.msra.mxu0 0.0
          %707 = vmatprep.subr.mxu0 0.0
          %708 = vmatpush1.msra.mxu0 0.0
          %709 = vmatprep.subr.mxu0 0.0
          %710 = vmatpush1.msra.mxu0 0.0
          %711 = vmatprep.subr.mxu0 0.0
          %712 = vmatpush1.msra.mxu0 0.0
          %713 = vmatprep.subr.mxu0 0.0
          %714 = vmatpush1.msra.mxu0 0.0
          %715 = vmatprep.subr.mxu0 0.0
          %716 = vmatpush1.msra.mxu0 0.0
          %717 = vmatprep.subr.mxu0 0.0
          %718 = vmatpush1.msra.mxu0 0.0
          %719 = vmatprep.subr.mxu0 0.0
          %720 = vmatpush1.msra.mxu0 0.0
          %721 = vmatprep.subr.mxu0 0.0
          %722 = vmatpush1.msra.mxu0 0.0
          %723 = vmatprep.subr.mxu0 0.0
          %724 = vmatpush1.msra.mxu0 0.0
          %725 = vmatprep.subr.mxu0 0.0
          %726 = vmatpush1.msra.mxu0 0.0
          %727 = vmatprep.mubr.f32.mxu0 0.0
          %728 = vmatmul.mubr.f32.gmra.mrb[0].mxu0 %v657
          %v729 = vpop.f32.mrb[0].mxu0
          %v730 = vadd.f32 0.0, %v729
          %v731 = vpop.f32.mrb[0].mxu0
          %732 = vdwg.mxu0
          %v734 = vrot.slane %v730, 2
          %v736 = vadd.f32 %v730, %v734
          %v737 = vxor.u32 %v736, 2147483648
          %v738 = vmul.f32 %v737, 1.442695
          %v739 = vpow.pop %v738
          %v740 = vadd.f32 %v739, 1.0
          %v741 = vrcp.pop %v740
          %v742 = vmul.f32 1.0, %v741
          %743 = vst.msk [vmem:[#allocation8] sm:$0x3] %vm426, %v742
          %v744 = vld [vmem:[%s3] sm:$0xff]
          %v745 = vld [vmem:[%s3 + $0x8] sm:$0xff]
          %v746 = vld [vmem:[%s3 + $0x10] sm:$0xff]
          %v747 = vld [vmem:[%s3 + $0x18] sm:$0xff]
          %v748 = vld [vmem:[%s3 + $0x20] sm:$0xff]
          %v749 = vld [vmem:[%s3 + $0x28] sm:$0xff]
          %v750 = vld [vmem:[%s3 + $0x30] sm:$0xff]
          %v751 = vld [vmem:[%s3 + $0x38] sm:$0xff]
          %v753 = vsel %vm579, %v564, 0
          %755 = vmatprep.subr.mxu0 0.0
          %756 = vmatpush1.msra.mxu0 %v744
          %757 = vmatprep.subr.mxu0 0.0
          %758 = vmatpush1.msra.mxu0 %v745
          %759 = vmatprep.subr.mxu0 0.0
          %760 = vmatpush1.msra.mxu0 %v746
          %761 = vmatprep.subr.mxu0 0.0
          %762 = vmatpush1.msra.mxu0 %v747
          %763 = vmatprep.subr.mxu0 0.0
          %764 = vmatpush1.msra.mxu0 %v748
          %765 = vmatprep.subr.mxu0 0.0
          %766 = vmatpush1.msra.mxu0 %v749
          %767 = vmatprep.subr.mxu0 0.0
          %768 = vmatpush1.msra.mxu0 %v750
          %769 = vmatprep.subr.mxu0 0.0
          %770 = vmatpush1.msra.mxu0 %v751
          %771 = vmatprep.subr.mxu0 0.0
          %772 = vmatpush1.msra.mxu0 0.0
          %773 = vmatprep.subr.mxu0 0.0
          %774 = vmatpush1.msra.mxu0 0.0
          %775 = vmatprep.subr.mxu0 0.0
          %776 = vmatpush1.msra.mxu0 0.0
          %777 = vmatprep.subr.mxu0 0.0
          %778 = vmatpush1.msra.mxu0 0.0
          %779 = vmatprep.subr.mxu0 0.0
          %780 = vmatpush1.msra.mxu0 0.0
          %781 = vmatprep.subr.mxu0 0.0
          %782 = vmatpush1.msra.mxu0 0.0
          %783 = vmatprep.subr.mxu0 0.0
          %784 = vmatpush1.msra.mxu0 0.0
          %785 = vmatprep.subr.mxu0 0.0
          %786 = vmatpush1.msra.mxu0 0.0
          %787 = vmatprep.subr.mxu0 0.0
          %788 = vmatpush1.msra.mxu0 0.0
          %789 = vmatprep.subr.mxu0 0.0
          %790 = vmatpush1.msra.mxu0 0.0
          %791 = vmatprep.subr.mxu0 0.0
          %792 = vmatpush1.msra.mxu0 0.0
          %793 = vmatprep.subr.mxu0 0.0
          %794 = vmatpush1.msra.mxu0 0.0
          %795 = vmatprep.subr.mxu0 0.0
          %796 = vmatpush1.msra.mxu0 0.0
          %797 = vmatprep.subr.mxu0 0.0
          %798 = vmatpush1.msra.mxu0 0.0
          %799 = vmatprep.subr.mxu0 0.0
          %800 = vmatpush1.msra.mxu0 0.0
          %801 = vmatprep.subr.mxu0 0.0
          %802 = vmatpush1.msra.mxu0 0.0
          %803 = vmatprep.subr.mxu0 0.0
          %804 = vmatpush1.msra.mxu0 0.0
          %805 = vmatprep.subr.mxu0 0.0
          %806 = vmatpush1.msra.mxu0 0.0
          %807 = vmatprep.subr.mxu0 0.0
          %808 = vmatpush1.msra.mxu0 0.0
          %809 = vmatprep.subr.mxu0 0.0
          %810 = vmatpush1.msra.mxu0 0.0
          %811 = vmatprep.subr.mxu0 0.0
          %812 = vmatpush1.msra.mxu0 0.0
          %813 = vmatprep.subr.mxu0 0.0
          %814 = vmatpush1.msra.mxu0 0.0
          %815 = vmatprep.subr.mxu0 0.0
          %816 = vmatpush1.msra.mxu0 0.0
          %817 = vmatprep.subr.mxu0 0.0
          %818 = vmatpush1.msra.mxu0 0.0
          %819 = vmatprep.mubr.f32.mxu0 0.0
          %820 = vmatmul.mubr.f32.gmra.mrb[0].mxu0 %v753
          %v821 = vpop.f32.mrb[0].mxu0
          %v822 = vadd.f32 0.0, %v821
          %v823 = vpop.f32.mrb[0].mxu0
          %824 = vdwg.mxu0
          %v825 = vmax.f32 %v822, 0.0
          %v826 = vld [vmem:[%s4] sm:$0xf]
          %v828 = vsel %vm655, %v825, 0
          %v831 = vsel %vm659, %v826, 0
          %833 = vmatprep.subr.mxu0 0.0
          %834 = vmatpush1.msra.mxu0 %v831
          %835 = vmatprep.subr.mxu0 0.0
          %836 = vmatpush1.msra.mxu0 0.0
          %837 = vmatprep.subr.mxu0 0.0
          %838 = vmatpush1.msra.mxu0 0.0
          %839 = vmatprep.subr.mxu0 0.0
          %840 = vmatpush1.msra.mxu0 0.0
          %841 = vmatprep.subr.mxu0 0.0
          %842 = vmatpush1.msra.mxu0 0.0
          %843 = vmatprep.subr.mxu0 0.0
          %844 = vmatpush1.msra.mxu0 0.0
          %845 = vmatprep.subr.mxu0 0.0
          %846 = vmatpush1.msra.mxu0 0.0
          %847 = vmatprep.subr.mxu0 0.0
          %848 = vmatpush1.msra.mxu0 0.0
          %849 = vmatprep.subr.mxu0 0.0
          %850 = vmatpush1.msra.mxu0 0.0
          %851 = vmatprep.subr.mxu0 0.0
          %852 = vmatpush1.msra.mxu0 0.0
          %853 = vmatprep.subr.mxu0 0.0
          %854 = vmatpush1.msra.mxu0 0.0
          %855 = vmatprep.subr.mxu0 0.0
          %856 = vmatpush1.msra.mxu0 0.0
          %857 = vmatprep.subr.mxu0 0.0
          %858 = vmatpush1.msra.mxu0 0.0
          %859 = vmatprep.subr.mxu0 0.0
          %860 = vmatpush1.msra.mxu0 0.0
          %861 = vmatprep.subr.mxu0 0.0
          %862 = vmatpush1.msra.mxu0 0.0
          %863 = vmatprep.subr.mxu0 0.0
          %864 = vmatpush1.msra.mxu0 0.0
          %865 = vmatprep.subr.mxu0 0.0
          %866 = vmatpush1.msra.mxu0 0.0
          %867 = vmatprep.subr.mxu0 0.0
          %868 = vmatpush1.msra.mxu0 0.0
          %869 = vmatprep.subr.mxu0 0.0
          %870 = vmatpush1.msra.mxu0 0.0
          %871 = vmatprep.subr.mxu0 0.0
          %872 = vmatpush1.msra.mxu0 0.0
          %873 = vmatprep.subr.mxu0 0.0
          %874 = vmatpush1.msra.mxu0 0.0
          %875 = vmatprep.subr.mxu0 0.0
          %876 = vmatpush1.msra.mxu0 0.0
          %877 = vmatprep.subr.mxu0 0.0
          %878 = vmatpush1.msra.mxu0 0.0
          %879 = vmatprep.subr.mxu0 0.0
          %880 = vmatpush1.msra.mxu0 0.0
          %881 = vmatprep.subr.mxu0 0.0
          %882 = vmatpush1.msra.mxu0 0.0
          %883 = vmatprep.subr.mxu0 0.0
          %884 = vmatpush1.msra.mxu0 0.0
          %885 = vmatprep.subr.mxu0 0.0
          %886 = vmatpush1.msra.mxu0 0.0
          %887 = vmatprep.subr.mxu0 0.0
          %888 = vmatpush1.msra.mxu0 0.0
          %889 = vmatprep.subr.mxu0 0.0
          %890 = vmatpush1.msra.mxu0 0.0
          %891 = vmatprep.subr.mxu0 0.0
          %892 = vmatpush1.msra.mxu0 0.0
          %893 = vmatprep.subr.mxu0 0.0
          %894 = vmatpush1.msra.mxu0 0.0
          %895 = vmatprep.subr.mxu0 0.0
          %896 = vmatpush1.msra.mxu0 0.0
          %897 = vmatprep.mubr.f32.mxu0 0.0
          %898 = vmatmul.mubr.f32.gmra.mrb[0].mxu0 %v828
          %v899 = vpop.f32.mrb[0].mxu0
          %v900 = vadd.f32 0.0, %v899
          %v901 = vpop.f32.mrb[0].mxu0
          %902 = vdwg.mxu0
          %v903 = vxor.u32 %v900, 2147483648
          %v904 = vmul.f32 %v903, 1.442695
          %v905 = vpow.pop %v904
          %v906 = vadd.f32 %v905, 1.0
          %v907 = vrcp.pop %v906
          %v908 = vmul.f32 1.0, %v907
          %909 = vst.msk [vmem:[#allocation7] sm:$0x3] %vm426, %v908
        $region52: #{tpu_custom_call.1} parent=39 // pred_fallthru
          _
        // Predicated region
        $region53: #{tpu_custom_call.1} parent=39 // pred_check
          %p910 = pneg %p146
        $region54: #{tpu_custom_call.1} parent=39 // pred_check_branch
          %912 = sbr.rel (%p910) target = $region56
        $region55: #{tpu_custom_call.1} parent=39 // pred_region
          %s914 = ssub.s32 32, 32
          %915 = vsyncadd [#allocation6], %s914
          %s917 = sshll.u32 [#allocation7], 4
          %s918 = int_to_ptr.vmem [resolvable:$true] %s917
          %920 = dma.vmem_to_hbm [thread:$0]  %s918, 32, %s5, [#allocation6]
        $region56: #{tpu_custom_call.1} parent=39 // pred_fallthru
          _
        // Predicated region
        $region57: #{tpu_custom_call.1} parent=39 // pred_check
          %p921 = pneg %p167
        $region58: #{tpu_custom_call.1} parent=39 // pred_check_branch
          %923 = sbr.rel (%p921) target = $region60
        $region59: #{tpu_custom_call.1} parent=39 // pred_region
          %s925 = ssub.s32 32, 32
          %926 = vsyncadd [#allocation9], %s925
          %s928 = sshll.u32 [#allocation8], 4
          %s929 = int_to_ptr.vmem [resolvable:$true] %s928
          %931 = dma.vmem_to_hbm [thread:$0]  %s929, 32, %s6, [#allocation9]
        $region60: #{tpu_custom_call.1} parent=39 // pred_fallthru
          _
        // Predicated region
        $region61: #{tpu_custom_call.1} parent=39 // pred_check
          %p932 = pneg %p146
        $region62: #{tpu_custom_call.1} parent=39 // pred_check_branch
          %934 = sbr.rel (%p932) target = $region64
        $region63: #{tpu_custom_call.1} parent=39 // pred_region
          %935 = dma.done [#allocation6], 32
        $region64: #{tpu_custom_call.1} parent=39 // pred_fallthru
          _
        // Predicated region
        $region65: #{tpu_custom_call.1} parent=39 // pred_check
          %p936 = pneg %p167
        $region66: #{tpu_custom_call.1} parent=39 // pred_check_branch
          %938 = sbr.rel (%p936) target = $region68
        $region67: #{tpu_custom_call.1} parent=39 // pred_region
          %939 = dma.done [#allocation9], 32
        $region68: #{tpu_custom_call.1} parent=39 // pred_fallthru
          _
      $region40: #{tpu_custom_call.1} parent=5 // pred_fallthru
        _
      %p940 = scmp.le.s32.totalorder 2, %s18
      // Predicated region
      $region69: #{tpu_custom_call.1} parent=5 // pred_check
        %p941 = pneg %p940
      $region70: #{tpu_custom_call.1} parent=5 // pred_check_branch
        %943 = sbr.rel (%p941) target = $region72
      $region71: #{tpu_custom_call.1} parent=5 // pred_region
        %s944 = ssub.s32 %s18, 2
      $region72: #{tpu_custom_call.1} parent=5 // pred_fallthru
        _
    $region6: #{tpu_custom_call.1} parent=1 // loop_footer
      %s22 = sadd.s32 1, %s18
    $region7: #{tpu_custom_call.1} parent=1 // loop_footer_branch
      %17 = sbr.rel target = $region3
    $region8: #{tpu_custom_call.1} parent=1 // loop_exit
      _
    %945 = vsyncpa [#allocation5], 1
    %s946 = scalar_lea.sflag [#allocation5], 1
    %947 = vsyncpa %s946, 1
    %948 = vsyncpa [#allocation6], 1
    %s949 = scalar_lea.sflag [#allocation6], 1
    %950 = vsyncpa %s949, 1
    %951 = vsyncpa [#allocation9], 1

</llo_original>
